<compile_context>
chip_gen: v7x
topology: tpu7x:2x2x1
jax: 0.10.0
libtpu: 0.0.40
codegen_flags: <defaults>
</compile_context>

<pallas_src>
import functools

import numpy as np
import jax
import jax.numpy as jnp
from jax.experimental import pallas as pl
from jax.experimental.pallas import tpu as pltpu


# ----------------------------------------------------------------------------
# PyTorch bilinear (align_corners=False) tap / weight construction
# ----------------------------------------------------------------------------
def _height_taps(h_in: int):
    """Bilinear resize H -> 1 touches at most two rows. Returns (i0, i1, lam)."""
    src = max(0.0, 0.5 * h_in - 0.5)          # (dst + 0.5) * scale - 0.5, dst = 0
    i0 = int(np.floor(src))
    i1 = min(i0 + 1, h_in - 1)
    lam = float(src - i0)
    return i0, i1, lam


@functools.lru_cache(maxsize=None)
def _width_matrix_np(w_in: int) -> np.ndarray:
    """(W, 2W) matrix M such that y @ M == bilinear resize W -> 2W (torch)."""
    w_out = 2 * w_in
    m = np.zeros((w_in, w_out), dtype=np.float32)
    scale = w_in / w_out                       # = 0.5
    for j in range(w_out):
        src = max(0.0, (j + 0.5) * scale - 0.5)
        i0 = int(np.floor(src))
        i1 = min(i0 + 1, w_in - 1)
        lam = src - i0
        m[i0, j] += 1.0 - lam
        m[i1, j] += lam
    return m


@functools.lru_cache(maxsize=None)
def _width_matrix_dev(w_in: int, backend: str) -> jax.Array:
    del backend  # part of the cache key: avoid stale buffers across backends
    return jnp.asarray(_width_matrix_np(w_in))


def _width_matrix(w_in: int) -> jax.Array:
    return _width_matrix_dev(w_in, jax.default_backend())


# ----------------------------------------------------------------------------
# Kernels
# ----------------------------------------------------------------------------
def _upsample_kernel_2tap(x0_ref, x1_ref, ww_ref, o_ref, *, w0, w1):
    # 2-tap bilinear reduction over H on the VPU; tap weights are static
    # constants.  Inputs arrive in their native dtype and are cast here.
    y = (w0 * x0_ref[...].astype(jnp.float32)
         + w1 * x1_ref[...].astype(jnp.float32))            # (TB, W) f32
    # W -> TW2 slice of the bilinear width upsample as an MXU matmul.
    # TODO(synk): for v5e at W >= ~1K, replace the O(W^2) matmul with a 2-tap
    # even/odd roll+interleave stencil (VPU/XLU) once a verified lane-interleave
    # lowering is available; the matmul lowers robustly and stays HBM-bound at
    # typical widths.
    o_ref[...] = jnp.dot(y, ww_ref[...],
                         preferred_element_type=jnp.float32).astype(o_ref.dtype)


def _upsample_kernel_1tap(x0_ref, ww_ref, o_ref):
    # lam == 0 (odd H or H == 1): only one H row carries weight.
    y = x0_ref[...].astype(jnp.float32)
    o_ref[...] = jnp.dot(y, ww_ref[...],
                         preferred_element_type=jnp.float32).astype(o_ref.dtype)


# ----------------------------------------------------------------------------
# Tiling / VMEM planning
# ----------------------------------------------------------------------------
def _round_up(x: int, m: int) -> int:
    return ((x + m - 1) // m) * m


def _vmem_plan():
    """Generation-aware VMEM limit + block budget (v5e/v6e: 128 MiB, v7x: 64 MiB)."""
    try:
        cap = int(pltpu.get_tpu_info().vmem_capacity_bytes)
    except Exception:                           # pragma: no cover
        cap = 64 * 1024 * 1024                  # conservative: v7x per-TC VMEM
    vmem_limit = min(int(cap * 0.85), 112 * 1024 * 1024)
    vmem_budget = int(vmem_limit * 0.6)         # headroom for pipeline scratch
    return vmem_limit, vmem_budget


def _pick_tiles(b: int, w: int, in_bytes: int, out_bytes: int, vmem_budget: int):
    """Pick (TB, TW2): batch rows per grid step and output-width tile."""
    w2 = 2 * w

    # Output-width tile: keep the (W, TW2) f32 weight slab (double-buffered by
    # the pipeline) well inside the VMEM budget -- it is the first thing to
    # blow v7x's 64 MiB at large W.
    tw2 = w2
    if w2 > 2048:
        tw2 = 2048
        while tw2 > 512 and 2 * w * tw2 * 4 > max(vmem_budget // 3, 1 << 20):
            tw2 //= 2

    lane = 128
    w_pad = _round_up(w, lane)
    tw2_pad = _round_up(tw2, lane)

    # VMEM bytes that scale with TB: two row inputs + one output, each double
    # buffered by the auto-pipeline, plus in-kernel f32 temporaries.
    per_row = (4 * w_pad * in_bytes + 2 * tw2_pad * out_bytes
               + 4 * (w_pad + tw2_pad))
    fixed = 2 * w * tw2 * 4                     # weight slab, double buffered

    avail = max(vmem_budget - fixed, 8 * per_row)
    tb = max(8, min(4096, (avail // per_row) // 8 * 8))
    if tb >= b:
        tb = b                                  # one full-dim block is always legal
        # Prefer >= 4 batch tiles (feeds both v7x TensorCores and overlaps DMA
        # with compute) as long as each tile still moves enough bytes to hide
        # the ~0.35 us per-grid-step overhead.
        bytes_per_row = 2 * w * in_bytes + w2 * out_bytes
        min_rows = _round_up(max(8, (512 * 1024) // max(bytes_per_row, 1)), 8)
        if b >= 2 * min_rows:
            tb = min(b, max(min_rows, _round_up(pl.cdiv(b, 4), 8)))
    return tb, tw2


# ----------------------------------------------------------------------------
# pallas_call wrapper
# ----------------------------------------------------------------------------
def _pallas_upsample_rows(xb, *, direct, i0, i1, w0, w1, ww, tb, tw2,
                          out_dtype, vmem_limit):
    """Row-select (H taps) + width-upsample over xb = (B, H, W) -> (B, 2W)."""
    b, h, w = xb.shape
    w2 = 2 * w
    two_tap = w1 != 0.0
    grid = (pl.cdiv(w2, tw2), pl.cdiv(b, tb))   # width tiles outer, batch inner

    if direct:
        # Squeezed size-1 H block with a static row index: the two bilinear
        # taps are DMA'd straight out of HBM, no intermediate gather.
        row0_spec = pl.BlockSpec((tb, None, w), lambda j, i: (i, i0, 0))
        row1_spec = pl.BlockSpec((tb, None, w), lambda j, i: (i, i1, 0))
        x0_op = x1_op = xb
    else:
        # Safety-net path (extra HBM round trip): slice rows in the wrapper.
        row0_spec = row1_spec = pl.BlockSpec((tb, w), lambda j, i: (i, 0))
        x0_op = xb[:, i0, :]
        x1_op = xb[:, i1, :] if two_tap else None

    ww_spec = pl.BlockSpec((w, tw2), lambda j, i: (0, j))    # resident per j
    out_spec = pl.BlockSpec((tb, tw2), lambda j, i: (i, j))
    # TODO(synk): for 2W < 128, fold batch rows into the lane axis (block-diag
    # weight) so output stores are lane-dense; needs an in-kernel sublane->lane
    # relayout of the H-combined rows, skipped here for lowering robustness.

    if two_tap:
        kernel = functools.partial(_upsample_kernel_2tap, w0=w0, w1=w1)
        in_specs = [row0_spec, row1_spec, ww_spec]
        operands = (x0_op, x1_op, ww)
    else:
        kernel = _upsample_kernel_1tap
        in_specs = [row0_spec, ww_spec]
        operands = (x0_op, ww)

    return pl.pallas_call(
        kernel,
        out_shape=jax.ShapeDtypeStruct((b, w2), out_dtype),
        grid=grid,
        in_specs=in_specs,
        out_specs=out_spec,
        compiler_params=pltpu.CompilerParams(
            dimension_semantics=("parallel", "parallel"),
            vmem_limit_bytes=vmem_limit,
        ),
    )(*operands)


def upsample(x: jax.Array, temb=None) -> jax.Array:
    """x: (N, C, H, W) -> (N, C, 1, 2*W), torch bilinear, align_corners=False."""
    del temb                                    # unused, matches torch forward
    n, c, h, w = x.shape
    w2 = 2 * w
    b = n * c

    i0, i1, lam = _height_taps(h)
    w0, w1 = 1.0 - lam, lam
    ww = _width_matrix(w)                       # (W, 2W) f32, cached device const

    xb = x.reshape(b, h, w)                     # free view; native dtype kept
    out_dtype = x.dtype

    itemsize = int(x.dtype.itemsize)
    vmem_limit, vmem_budget = _vmem_plan()
    tb, tw2 = _pick_tiles(b, w, itemsize, itemsize, vmem_budget)

    kwargs = dict(i0=i0, i1=i1, w0=w0, w1=w1, ww=ww, tb=tb, tw2=tw2,
                  out_dtype=out_dtype, vmem_limit=vmem_limit)
    try:
        out = _pallas_upsample_rows(xb, direct=True, **kwargs)
    except Exception:
        # Safety net: if this Pallas/Mosaic version rejects the squeezed-H
        # BlockSpec, fall back to the previously-validated gather formulation
        # (numerically identical, one extra HBM round trip).
        out = _pallas_upsample_rows(xb, direct=False, **kwargs)

    return out.reshape(n, c, 1, w2)


# ----------------------------------------------------------------------------
# Pure-numpy reference (same PyTorch bilinear formulas) for a sanity check
# ----------------------------------------------------------------------------
def _reference(x: np.ndarray) -> np.ndarray:
    n, c, h, w = x.shape
    i0, i1, lam = _height_taps(h)
    y = (1.0 - lam) * x[:, :, i0, :] + lam * x[:, :, i1, :]      # (N, C, W)
    out = np.einsum("ncw,wk->nck", y, _width_matrix_np(w))       # (N, C, 2W)
    return out[:, :, None, :]                                    # (N, C, 1, 2W)


if __name__ == "__main__":
    key = jax.random.PRNGKey(0)
    N, C, H, W = 2, 4, 16, 16
    x = jax.random.normal(key, (N, C, H, W), dtype=jnp.float32)

    out = jax.block_until_ready(upsample(x))
    assert out.shape == (N, C, 1, 2 * W), out.shape
    ref = _reference(np.asarray(x))
    assert np.allclose(np.asarray(out), ref, atol=1e-5, rtol=1e-5)

    # Odd H (1-tap height path) + batch that is not a multiple of 8.
    x2 = jax.random.normal(jax.random.PRNGKey(1), (3, 3, 5, 16), dtype=jnp.float32)
    out2 = jax.block_until_ready(upsample(x2))
    assert out2.shape == (3, 3, 1, 32), out2.shape
    assert np.allclose(np.asarray(out2), _reference(np.asarray(x2)),
                       atol=1e-5, rtol=1e-5)

    # Native-dtype path: bf16 stays bf16 through the DMA and on the output.
    x3 = x.astype(jnp.bfloat16)
    out3 = jax.block_until_ready(upsample(x3))
    assert out3.dtype == jnp.bfloat16, out3.dtype
    ref3 = _reference(np.asarray(x3.astype(jnp.float32)))
    assert np.allclose(np.asarray(out3.astype(jnp.float32)), ref3,
                       atol=2e-2, rtol=2e-2)

    print("KERNEL_OK")
</pallas_src>

<mosaic_0001>
module attributes {stable_mosaic.version = 11 : i64} {
  func.func @_upsample_kernel_2tap(%arg0: i32, %arg1: i32, %arg2: memref<8x16xf32, #tpu.memory_space<vmem>>, %arg3: memref<8x16xf32, #tpu.memory_space<vmem>>, %arg4: memref<16x32xf32, #tpu.memory_space<vmem>>, %arg5: memref<8x32xf32, #tpu.memory_space<vmem>>) attributes {dimension_semantics = [#tpu.dimension_semantics<parallel>, #tpu.dimension_semantics<parallel>], iteration_bounds = array<i64: 1, 1>, scalar_prefetch = 0 : i64, scratch_operands = 0 : i64, tpu.core_type = #tpu.core_type<tc>, window_params = [{transform_indices = @transform_0, window_bounds = array<i64: 8, 16>}, {transform_indices = @transform_1, window_bounds = array<i64: 8, 16>}, {transform_indices = @transform_2, window_bounds = array<i64: 16, 32>}, {transform_indices = @transform_3, window_bounds = array<i64: 8, 32>}]} {
    %c0 = arith.constant 0 : index
    %c0_0 = arith.constant 0 : index
    %0 = vector.load %arg2[%c0, %c0_0] : memref<8x16xf32, #tpu.memory_space<vmem>>, vector<8x16xf32>
    %cst = arith.constant 5.000000e-01 : f32
    %1 = vector.broadcast %cst : f32 to vector<8x16xf32>
    %2 = arith.mulf %1, %0 : vector<8x16xf32>
    %c0_1 = arith.constant 0 : index
    %c0_2 = arith.constant 0 : index
    %3 = vector.load %arg3[%c0_1, %c0_2] : memref<8x16xf32, #tpu.memory_space<vmem>>, vector<8x16xf32>
    %cst_3 = arith.constant 5.000000e-01 : f32
    %4 = vector.broadcast %cst_3 : f32 to vector<8x16xf32>
    %5 = arith.mulf %4, %3 : vector<8x16xf32>
    %6 = arith.addf %2, %5 : vector<8x16xf32>
    %c0_4 = arith.constant 0 : index
    %c0_5 = arith.constant 0 : index
    %7 = vector.load %arg4[%c0_4, %c0_5] : memref<16x32xf32, #tpu.memory_space<vmem>>, vector<16x32xf32>
    %cst_6 = arith.constant dense<0.000000e+00> : vector<8x32xf32>
    %8 = tpu.matmul %6, %7, %cst_6 {dimension_numbers = #tpu.dot_dimension_numbers<[1], [0], [0], [1], [0, 0, 1, 1], [], []>} : vector<8x16xf32>, vector<16x32xf32>, vector<8x32xf32> -> vector<8x32xf32>
    %c0_7 = arith.constant 0 : index
    %c0_8 = arith.constant 0 : index
    %9 = vector.load %arg5[%c0_7, %c0_8] : memref<8x32xf32, #tpu.memory_space<vmem>>, vector<8x32xf32>
    tpu.vector_store %arg5[%c0_7, %c0_8], %8 {strides = array<i32>} : memref<8x32xf32, #tpu.memory_space<vmem>>, vector<8x32xf32>,
    return
  }
  func.func @transform_0(%arg0: i32, %arg1: i32) -> (i32, i32) {
    %c0_i32 = arith.constant 0 : i32
    %c0_i32_0 = arith.constant 0 : i32
    return %arg1, %c0_i32 : i32, i32
  }
  func.func @transform_1(%arg0: i32, %arg1: i32) -> (i32, i32) {
    %c0_i32 = arith.constant 0 : i32
    %c0_i32_0 = arith.constant 0 : i32
    return %arg1, %c0_i32 : i32, i32
  }
  func.func @transform_2(%arg0: i32, %arg1: i32) -> (i32, i32) {
    %c0_i32 = arith.constant 0 : i32
    %c0_i32_0 = arith.constant 0 : i32
    return %c0_i32, %arg0 : i32, i32
  }
  func.func @transform_3(%arg0: i32, %arg1: i32) -> (i32, i32) {
    %c0_i32 = arith.constant 0 : i32
    return %arg1, %arg0 : i32, i32
  }
}

</mosaic_0001>

<llo_original>
// kernel: tpu_custom_call.1
$region0: #{tpu_custom_call.1}
  #allocation0 [shape = 'u32[]', space=smem, size = 0x4, offset = 0x4, fixed_abs, tag = 'smem constant byte address 0x4 - core index']
  #allocation1 [shape = 'u32[144,128]{1,0:T(1,128)}', space=vmem, size = 0x12000, scoped, tag = 'internal scratch']
  %s0 = inlined_call_operand.hbm [shape: f32[8,16], index: 0, kind: input, shape index: {}]
  %s1 = inlined_call_operand.hbm [shape: f32[8,16], index: 1, kind: input, shape index: {}]
  %s2 = inlined_call_operand.hbm [shape: f32[16,32], index: 2, kind: input, shape index: {}]
  %s3 = inlined_call_operand.hbm [shape: f32[8,32], index: 3, kind: output, shape index: {}]
  %s4 = sld [smem:[#allocation0]]
  $region34: #{tpu_custom_call.1} parent=0
    _
  %s6 = ssub.s32 1, %s4
  %s7 = scalar_select 0, %s6, %s4
  $region1: #{tpu_custom_call.1} parent=0
    #allocation2 [shape = 'u8[4096]{0}', space=vmem, size = 0x1000, scoped, tag = 'input window, operand 0, single buffered']
    #allocation3 [shape = 's32[1]{0}', space=sflag, size = 0x4, scoped, tag = 'scoped memory for tpu_custom_call.1']
    #allocation4 [shape = 's32[1]{0}', space=sflag, size = 0x4, scoped, tag = 'scoped memory for tpu_custom_call.1']
    #allocation5 [shape = 'u8[4096]{0}', space=vmem, size = 0x1000, scoped, tag = 'input window, operand 1, single buffered']
    #allocation6 [shape = 's32[1]{0}', space=sflag, size = 0x4, scoped, tag = 'scoped memory for tpu_custom_call.1']
    #allocation7 [shape = 'u8[8192]{0}', space=vmem, size = 0x2000, scoped, tag = 'input window, operand 2, single buffered']
    #allocation8 [shape = 'u8[4096]{0}', space=vmem, size = 0x1000, scoped, tag = 'output window, operand 0, single buffered']
    %8 = vsyncpa [#allocation3], 0
    %9 = vsyncpa [#allocation6], 0
    %10 = vsyncpa [#allocation4], 0
    // Predicated region
    $region2: #{tpu_custom_call.1} parent=1 // pred_check
      _
    $region3: #{tpu_custom_call.1} parent=1 // pred_check_branch
      %12 = sbr.rel (0) target = $region5
    $region4: #{tpu_custom_call.1} parent=1 // pred_region
      %s14 = ssub.s32 128, 128
      %15 = vsyncadd [#allocation3], %s14
      %s17 = sshll.u32 [#allocation2], 4
      %s18 = int_to_ptr.vmem [resolvable:$true] %s17
      %20 = dma.hbm_to_vmem [thread:$0]  %s0, 128, %s18, [#allocation3]
    $region5: #{tpu_custom_call.1} parent=1 // pred_fallthru
      _
    // Predicated region
    $region6: #{tpu_custom_call.1} parent=1 // pred_check
      _
    $region7: #{tpu_custom_call.1} parent=1 // pred_check_branch
      %22 = sbr.rel (0) target = $region9
    $region8: #{tpu_custom_call.1} parent=1 // pred_region
      %s24 = ssub.s32 128, 128
      %25 = vsyncadd [#allocation6], %s24
      %s27 = sshll.u32 [#allocation5], 4
      %s28 = int_to_ptr.vmem [resolvable:$true] %s27
      %30 = dma.hbm_to_vmem [thread:$0]  %s1, 128, %s28, [#allocation6]
    $region9: #{tpu_custom_call.1} parent=1 // pred_fallthru
      _
    // Predicated region
    $region10: #{tpu_custom_call.1} parent=1 // pred_check
      _
    $region11: #{tpu_custom_call.1} parent=1 // pred_check_branch
      %32 = sbr.rel (0) target = $region13
    $region12: #{tpu_custom_call.1} parent=1 // pred_region
      %s34 = ssub.s32 256, 256
      %35 = vsyncadd [#allocation6], %s34
      %s36 = sshll.u32 [#allocation7], 4
      %s37 = int_to_ptr.vmem [resolvable:$true] %s36
      %42 = dma.hbm_to_vmem [thread:$0]  %s2, 256, %s37, [#allocation6], 128, 128, 8
    $region13: #{tpu_custom_call.1} parent=1 // pred_fallthru
      _
    // Predicated region
    $region14: #{tpu_custom_call.1} parent=1 // pred_check
      _
    $region15: #{tpu_custom_call.1} parent=1 // pred_check_branch
      %44 = sbr.rel (0) target = $region17
    $region16: #{tpu_custom_call.1} parent=1 // pred_region
      %45 = dma.done [#allocation3], 128
    $region17: #{tpu_custom_call.1} parent=1 // pred_fallthru
      _
    // Predicated region
    $region18: #{tpu_custom_call.1} parent=1 // pred_check
      _
    $region19: #{tpu_custom_call.1} parent=1 // pred_check_branch
      %47 = sbr.rel (0) target = $region21
    $region20: #{tpu_custom_call.1} parent=1 // pred_region
      %48 = dma.done [#allocation6], 128
    $region21: #{tpu_custom_call.1} parent=1 // pred_fallthru
      _
    // Predicated region
    $region22: #{tpu_custom_call.1} parent=1 // pred_check
      _
    $region23: #{tpu_custom_call.1} parent=1 // pred_check_branch
      %50 = sbr.rel (0) target = $region25
    $region24: #{tpu_custom_call.1} parent=1 // pred_region
      %51 = dma.done [#allocation6], 256
    $region25: #{tpu_custom_call.1} parent=1 // pred_fallthru
      _
    %v52 = vld [vmem:[#allocation2] sm:$0xff]
    %v53 = vmul.f32 %v52, 0.5
    %v54 = vld [vmem:[#allocation5] sm:$0xff]
    %v55 = vmul.f32 %v54, 0.5
    %v56 = vadd.f32 %v53, %v55
    %v57 = vld [vmem:[#allocation7] sm:$0xff]
    %v58 = vld [vmem:[#allocation7 + $0x8] sm:$0xff]
    %vm59 = vcmask 130048
    %v61 = vsel %vm59, %v56, 0
    %63 = vmatprep.subr.mxu0 0.0
    %64 = vmatpush1.msra.mxu0 %v57
    %65 = vmatprep.subr.mxu0 0.0
    %66 = vmatpush1.msra.mxu0 %v58
    %67 = vmatprep.subr.mxu0 0.0
    %68 = vmatpush1.msra.mxu0 0.0
    %69 = vmatprep.subr.mxu0 0.0
    %70 = vmatpush1.msra.mxu0 0.0
    %71 = vmatprep.subr.mxu0 0.0
    %72 = vmatpush1.msra.mxu0 0.0
    %73 = vmatprep.subr.mxu0 0.0
    %74 = vmatpush1.msra.mxu0 0.0
    %75 = vmatprep.subr.mxu0 0.0
    %76 = vmatpush1.msra.mxu0 0.0
    %77 = vmatprep.subr.mxu0 0.0
    %78 = vmatpush1.msra.mxu0 0.0
    %79 = vmatprep.subr.mxu0 0.0
    %80 = vmatpush1.msra.mxu0 0.0
    %81 = vmatprep.subr.mxu0 0.0
    %82 = vmatpush1.msra.mxu0 0.0
    %83 = vmatprep.subr.mxu0 0.0
    %84 = vmatpush1.msra.mxu0 0.0
    %85 = vmatprep.subr.mxu0 0.0
    %86 = vmatpush1.msra.mxu0 0.0
    %87 = vmatprep.subr.mxu0 0.0
    %88 = vmatpush1.msra.mxu0 0.0
    %89 = vmatprep.subr.mxu0 0.0
    %90 = vmatpush1.msra.mxu0 0.0
    %91 = vmatprep.subr.mxu0 0.0
    %92 = vmatpush1.msra.mxu0 0.0
    %93 = vmatprep.subr.mxu0 0.0
    %94 = vmatpush1.msra.mxu0 0.0
    %95 = vmatprep.subr.mxu0 0.0
    %96 = vmatpush1.msra.mxu0 0.0
    %97 = vmatprep.subr.mxu0 0.0
    %98 = vmatpush1.msra.mxu0 0.0
    %99 = vmatprep.subr.mxu0 0.0
    %100 = vmatpush1.msra.mxu0 0.0
    %101 = vmatprep.subr.mxu0 0.0
    %102 = vmatpush1.msra.mxu0 0.0
    %103 = vmatprep.subr.mxu0 0.0
    %104 = vmatpush1.msra.mxu0 0.0
    %105 = vmatprep.subr.mxu0 0.0
    %106 = vmatpush1.msra.mxu0 0.0
    %107 = vmatprep.subr.mxu0 0.0
    %108 = vmatpush1.msra.mxu0 0.0
    %109 = vmatprep.subr.mxu0 0.0
    %110 = vmatpush1.msra.mxu0 0.0
    %111 = vmatprep.subr.mxu0 0.0
    %112 = vmatpush1.msra.mxu0 0.0
    %113 = vmatprep.subr.mxu0 0.0
    %114 = vmatpush1.msra.mxu0 0.0
    %115 = vmatprep.subr.mxu0 0.0
    %116 = vmatpush1.msra.mxu0 0.0
    %117 = vmatprep.subr.mxu0 0.0
    %118 = vmatpush1.msra.mxu0 0.0
    %119 = vmatprep.subr.mxu0 0.0
    %120 = vmatpush1.msra.mxu0 0.0
    %121 = vmatprep.subr.mxu0 0.0
    %122 = vmatpush1.msra.mxu0 0.0
    %123 = vmatprep.subr.mxu0 0.0
    %124 = vmatpush1.msra.mxu0 0.0
    %125 = vmatprep.subr.mxu0 0.0
    %126 = vmatpush1.msra.mxu0 0.0
    %127 = vmatprep.mubr.f32.mxu0 0.0
    %128 = vmatmul.mubr.f32.gmra.mrb[0].mxu0 %v61
    %v129 = vpop.f32.mrb[0].mxu0
    %v130 = vadd.f32 0.0, %v129
    %v131 = vpop.f32.mrb[0].mxu0
    %132 = vdwg.mxu0
    %vm133 = vcmask 261120
    %134 = vst.msk [vmem:[#allocation8] sm:$0xff] %vm133, %v130
    // Predicated region
    $region26: #{tpu_custom_call.1} parent=1 // pred_check
      _
    $region27: #{tpu_custom_call.1} parent=1 // pred_check_branch
      %136 = sbr.rel (0) target = $region29
    $region28: #{tpu_custom_call.1} parent=1 // pred_region
      %s138 = ssub.s32 128, 128
      %139 = vsyncadd [#allocation4], %s138
      %s141 = sshll.u32 [#allocation8], 4
      %s142 = int_to_ptr.vmem [resolvable:$true] %s141
      %144 = dma.vmem_to_hbm [thread:$0]  %s142, 128, %s3, [#allocation4]
    $region29: #{tpu_custom_call.1} parent=1 // pred_fallthru
      _
    // Predicated region
    $region30: #{tpu_custom_call.1} parent=1 // pred_check
      _
    $region31: #{tpu_custom_call.1} parent=1 // pred_check_branch
      %146 = sbr.rel (0) target = $region33
    $region32: #{tpu_custom_call.1} parent=1 // pred_region
      %147 = dma.done [#allocation4], 128
    $region33: #{tpu_custom_call.1} parent=1 // pred_fallthru
      _
    %148 = vsyncpa [#allocation3], 1
    %149 = vsyncpa [#allocation6], 1
    %150 = vsyncpa [#allocation4], 1

</llo_original>
